<compile_context>
chip_gen: v7x
topology: tpu7x:2x2x1
jax: 0.10.0
libtpu: 0.0.40
codegen_flags: <defaults>
</compile_context>

<pallas_src>
import functools

import jax
import jax.numpy as jnp
from jax.experimental import pallas as pl
from jax.experimental.pallas import tpu as pltpu

_VMEM_LIMIT_BYTES = 48 * 1024 * 1024


# ---------------------------------------------------------------------------
# Kernel 1: fused dense (x @ W + b) + LayerNorm over the hidden axis.
# ---------------------------------------------------------------------------
def _transform_ln_kernel(x_ref, w_ref, p_ref, o_ref, *, eps):
    # x_ref: (tile_rows, hidden)  activation tile
    # w_ref: (hidden, hidden)     dense weight in (in, out) layout
    # p_ref: (3, hidden)          packed params: [dense bias; gamma; beta]
    h = jnp.dot(x_ref[...], w_ref[...], preferred_element_type=jnp.float32)
    h = h + p_ref[0:1, :].astype(jnp.float32)

    n = h.shape[-1]
    # One-pass stats: sum and sum-of-squares together (one fewer XLU reduce).
    s1 = jnp.sum(h, axis=-1, keepdims=True)
    s2 = jnp.sum(h * h, axis=-1, keepdims=True)
    mean = s1 * (1.0 / n)
    var = jnp.maximum(s2 * (1.0 / n) - mean * mean, 0.0)  # biased variance
    inv = jax.lax.rsqrt(var + eps)
    y = (h - mean) * inv

    gamma = p_ref[1:2, :].astype(jnp.float32)
    beta = p_ref[2:3, :].astype(jnp.float32)
    o_ref[...] = (gamma * y + beta).astype(o_ref.dtype)


def _fused_transform(x2, w_io, packed, *, eps, tile_rows=512):
    rows, hidden = x2.shape
    tm = min(tile_rows, rows)  # tile_rows is a multiple of 8; else full-extent block
    grid = (pl.cdiv(rows, tm),)
    return pl.pallas_call(
        functools.partial(_transform_ln_kernel, eps=eps),
        out_shape=jax.ShapeDtypeStruct((rows, hidden), x2.dtype),
        grid_spec=pltpu.PrefetchScalarGridSpec(
            num_scalar_prefetch=0,
            grid=grid,
            in_specs=[
                pl.BlockSpec((tm, hidden), lambda i: (i, 0)),
                pl.BlockSpec((hidden, hidden), lambda i: (0, 0)),
                pl.BlockSpec((3, hidden), lambda i: (0, 0)),
            ],
            out_specs=pl.BlockSpec((tm, hidden), lambda i: (i, 0)),
        ),
        compiler_params=pltpu.CompilerParams(
            dimension_semantics=("parallel",),
            vmem_limit_bytes=_VMEM_LIMIT_BYTES,
        ),
    )(x2, w_io, packed)


# ---------------------------------------------------------------------------
# Kernel 2: tiled MXU matmul + bias with K-reduction axis and f32 accumulator.
# ---------------------------------------------------------------------------
def _matmul_bias_kernel(x_ref, w_ref, b_ref, o_ref, acc_ref):
    k = pl.program_id(2)

    @pl.when(k == 0)
    def _():
        acc_ref[...] = jnp.zeros_like(acc_ref)

    acc_ref[...] += jnp.dot(x_ref[...], w_ref[...], preferred_element_type=jnp.float32)

    @pl.when(k == pl.num_programs(2) - 1)
    def _():
        o_ref[...] = (acc_ref[...] + b_ref[...].astype(jnp.float32)).astype(o_ref.dtype)


def _pick_tile_k(k_dim, max_tile):
    # Choose a K tile that exactly divides K (partial K blocks would corrupt the
    # reduction); prefer multiples of 128.
    if k_dim <= max_tile:
        return k_dim
    t = max_tile - (max_tile % 128)
    while t >= 128:
        if k_dim % t == 0:
            return t
        t -= 128
    return k_dim  # fall back to a single full-K block


def _linear(x2, w_io, bias, *, tile_m=512, tile_n=512, max_tile_k=512):
    rows, k_dim = x2.shape
    _, n = w_io.shape
    tm = min(tile_m, rows)
    tn = min(tile_n, n)
    tk = _pick_tile_k(k_dim, max_tile_k)
    grid = (pl.cdiv(rows, tm), pl.cdiv(n, tn), pl.cdiv(k_dim, tk))
    bias2 = bias.reshape(1, n)
    return pl.pallas_call(
        _matmul_bias_kernel,
        out_shape=jax.ShapeDtypeStruct((rows, n), x2.dtype),
        grid_spec=pltpu.PrefetchScalarGridSpec(
            num_scalar_prefetch=0,
            grid=grid,
            in_specs=[
                pl.BlockSpec((tm, tk), lambda i, j, kk: (i, kk)),
                pl.BlockSpec((tk, tn), lambda i, j, kk: (kk, j)),
                pl.BlockSpec((1, tn), lambda i, j, kk: (0, j)),
            ],
            out_specs=pl.BlockSpec((tm, tn), lambda i, j, kk: (i, j)),
            scratch_shapes=[pltpu.VMEM((tm, tn), jnp.float32)],
        ),
        compiler_params=pltpu.CompilerParams(
            dimension_semantics=("parallel", "parallel", "arbitrary"),
            vmem_limit_bytes=_VMEM_LIMIT_BYTES,
        ),
    )(x2, w_io, bias2)


# ---------------------------------------------------------------------------
# Module-level forward. Params are given in PyTorch layout: Linear weight is
# (out_features, in_features); we transpose once on the host side.
# ---------------------------------------------------------------------------
def bert_pretraining_heads(sequence_output, pooled_output, params, *, eps=1e-12):
    b, s, h = sequence_output.shape
    x2 = sequence_output.reshape(b * s, h)

    def prediction_head(p):
        packed = jnp.stack([p["dense_b"], p["ln_gamma"], p["ln_beta"]], axis=0)  # (3, H)
        transformed = _fused_transform(x2, jnp.transpose(p["dense_w"]), packed, eps=eps)
        return _linear(transformed, jnp.transpose(p["decoder_w"]), p["decoder_b"])

    prediction_scores = prediction_head(params["predictions"]).reshape(b, s, -1)
    prediction_scores_ss = prediction_head(params["predictions_ss"]).reshape(b, s, -1)
    seq_relationship = _linear(
        pooled_output,
        jnp.transpose(params["seq_relationship_w"]),
        params["seq_relationship_b"],
    )
    return prediction_scores, prediction_scores_ss, seq_relationship


# ---------------------------------------------------------------------------
# Self-test at small shapes.
# ---------------------------------------------------------------------------
if __name__ == "__main__":
    batch, seq, hidden = 2, 8, 32
    vocab_size, ss_size = 64, 16
    eps = 1e-12

    key = jax.random.PRNGKey(0)
    ks = jax.random.split(key, 10)
    scale = 1.0 / (hidden ** 0.5)

    def rnd(k, shape, s=1.0):
        return s * jax.random.normal(k, shape, dtype=jnp.float32)

    sequence_output = rnd(ks[0], (batch, seq, hidden))
    pooled_output = rnd(ks[1], (batch, hidden))

    params = {
        "predictions": {
            "dense_w": rnd(ks[2], (hidden, hidden), scale),      # (out, in)
            "dense_b": rnd(ks[3], (hidden,), scale),
            "ln_gamma": jnp.ones((hidden,), jnp.float32),
            "ln_beta": jnp.zeros((hidden,), jnp.float32),
            "decoder_w": rnd(ks[4], (vocab_size, hidden), scale),  # (out, in), bias-free Linear
            "decoder_b": jnp.zeros((vocab_size,), jnp.float32),    # separate bias Parameter (zeros)
        },
        "predictions_ss": {
            "dense_w": rnd(ks[5], (hidden, hidden), scale),
            "dense_b": rnd(ks[6], (hidden,), scale),
            "ln_gamma": jnp.ones((hidden,), jnp.float32),
            "ln_beta": jnp.zeros((hidden,), jnp.float32),
            "decoder_w": rnd(ks[7], (ss_size, hidden), scale),
            "decoder_b": jnp.zeros((ss_size,), jnp.float32),
        },
        "seq_relationship_w": rnd(ks[8], (2, hidden), scale),
        "seq_relationship_b": rnd(ks[9], (2,), scale),
    }

    scores, scores_ss, seq_rel = bert_pretraining_heads(
        sequence_output, pooled_output, params, eps=eps
    )
    scores, scores_ss, seq_rel = jax.block_until_ready((scores, scores_ss, seq_rel))

    # Plain-JAX reference (same math as the PyTorch module forward).
    def ref_head(x, p):
        hh = x @ p["dense_w"].T + p["dense_b"]
        u = hh.mean(-1, keepdims=True)
        v = ((hh - u) ** 2).mean(-1, keepdims=True)
        hh = p["ln_gamma"] * ((hh - u) / jnp.sqrt(v + eps)) + p["ln_beta"]
        return hh @ p["decoder_w"].T + p["decoder_b"]

    ref_scores = ref_head(sequence_output, params["predictions"])
    ref_scores_ss = ref_head(sequence_output, params["predictions_ss"])
    ref_seq_rel = pooled_output @ params["seq_relationship_w"].T + params["seq_relationship_b"]

    assert jnp.allclose(scores, ref_scores, atol=1e-4, rtol=1e-4), "prediction_scores mismatch"
    assert jnp.allclose(scores_ss, ref_scores_ss, atol=1e-4, rtol=1e-4), "prediction_scores_ss mismatch"
    assert jnp.allclose(seq_rel, ref_seq_rel, atol=1e-4, rtol=1e-4), "seq_relationship mismatch"

    print("KERNEL_OK")
</pallas_src>

<mosaic_0001>
module attributes {stable_mosaic.version = 11 : i64} {
  func.func @_transform_ln_kernel(%arg0: i32, %arg1: memref<16x32xf32, #tpu.memory_space<vmem>>, %arg2: memref<32x32xf32, #tpu.memory_space<vmem>>, %arg3: memref<3x32xf32, #tpu.memory_space<vmem>>, %arg4: memref<16x32xf32, #tpu.memory_space<vmem>>) attributes {dimension_semantics = [#tpu.dimension_semantics<parallel>], iteration_bounds = array<i64: 1>, scalar_prefetch = 0 : i64, scratch_operands = 0 : i64, tpu.core_type = #tpu.core_type<tc>, window_params = [{transform_indices = @transform_0, window_bounds = array<i64: 16, 32>}, {pipeline_mode = #tpu.pipeline_mode<synchronous>, transform_indices = @transform_1, window_bounds = array<i64: 32, 32>}, {pipeline_mode = #tpu.pipeline_mode<synchronous>, transform_indices = @transform_2, window_bounds = array<i64: 3, 32>}, {transform_indices = @transform_3, window_bounds = array<i64: 16, 32>}]} {
    %c0 = arith.constant 0 : index
    %c0_0 = arith.constant 0 : index
    %0 = vector.load %arg1[%c0, %c0_0] : memref<16x32xf32, #tpu.memory_space<vmem>>, vector<16x32xf32>
    %c0_1 = arith.constant 0 : index
    %c0_2 = arith.constant 0 : index
    %1 = vector.load %arg2[%c0_1, %c0_2] : memref<32x32xf32, #tpu.memory_space<vmem>>, vector<32x32xf32>
    %cst = arith.constant dense<0.000000e+00> : vector<16x32xf32>
    %2 = tpu.matmul %0, %1, %cst {dimension_numbers = #tpu.dot_dimension_numbers<[1], [0], [0], [1], [0, 0, 1, 1], [], []>} : vector<16x32xf32>, vector<32x32xf32>, vector<16x32xf32> -> vector<16x32xf32>
    %c0_3 = arith.constant 0 : index
    %c0_4 = arith.constant 0 : index
    %3 = vector.load %arg3[%c0_3, %c0_4] : memref<3x32xf32, #tpu.memory_space<vmem>>, vector<1x32xf32>
    %4 = vector.broadcast %3 : vector<1x32xf32> to vector<16x32xf32>
    %5 = arith.addf %2, %4 : vector<16x32xf32>
    %cst_5 = arith.constant dense<0.000000e+00> : vector<16xf32>
    %6 = vector.multi_reduction <add>, %5, %cst_5 [1] : vector<16x32xf32> to vector<16xf32>
    %7 = vector.shape_cast %6 : vector<16xf32> to vector<16x1xf32>
    %8 = arith.mulf %5, %5 : vector<16x32xf32>
    %cst_6 = arith.constant dense<0.000000e+00> : vector<16xf32>
    %9 = vector.multi_reduction <add>, %8, %cst_6 [1] : vector<16x32xf32> to vector<16xf32>
    %10 = vector.shape_cast %9 : vector<16xf32> to vector<16x1xf32>
    %cst_7 = arith.constant 3.125000e-02 : f32
    %11 = vector.broadcast %cst_7 : f32 to vector<16x1xf32>
    %12 = arith.mulf %7, %11 : vector<16x1xf32>
    %cst_8 = arith.constant 3.125000e-02 : f32
    %13 = vector.broadcast %cst_8 : f32 to vector<16x1xf32>
    %14 = arith.mulf %10, %13 : vector<16x1xf32>
    %15 = arith.mulf %12, %12 : vector<16x1xf32>
    %16 = arith.subf %14, %15 : vector<16x1xf32>
    %cst_9 = arith.constant 0.000000e+00 : f32
    %17 = vector.broadcast %cst_9 : f32 to vector<16x1xf32>
    %18 = arith.maximumf %16, %17 : vector<16x1xf32>
    %cst_10 = arith.constant 9.99999996E-13 : f32
    %19 = vector.broadcast %cst_10 : f32 to vector<16x1xf32>
    %20 = arith.addf %18, %19 : vector<16x1xf32>
    %21 = math.rsqrt %20 : vector<16x1xf32>
    %22 = vector.broadcast %12 : vector<16x1xf32> to vector<16x32xf32>
    %23 = arith.subf %5, %22 : vector<16x32xf32>
    %24 = vector.broadcast %21 : vector<16x1xf32> to vector<16x32xf32>
    %25 = arith.mulf %23, %24 : vector<16x32xf32>
    %c1 = arith.constant 1 : index
    %c0_11 = arith.constant 0 : index
    %26 = vector.load %arg3[%c1, %c0_11] : memref<3x32xf32, #tpu.memory_space<vmem>>, vector<1x32xf32>
    %c2 = arith.constant 2 : index
    %c0_12 = arith.constant 0 : index
    %27 = vector.load %arg3[%c2, %c0_12] : memref<3x32xf32, #tpu.memory_space<vmem>>, vector<1x32xf32>
    %28 = vector.broadcast %26 : vector<1x32xf32> to vector<16x32xf32>
    %29 = arith.mulf %28, %25 : vector<16x32xf32>
    %30 = vector.broadcast %27 : vector<1x32xf32> to vector<16x32xf32>
    %31 = arith.addf %29, %30 : vector<16x32xf32>
    %c0_13 = arith.constant 0 : index
    %c0_14 = arith.constant 0 : index
    %32 = vector.load %arg4[%c0_13, %c0_14] : memref<16x32xf32, #tpu.memory_space<vmem>>, vector<16x32xf32>
    tpu.vector_store %arg4[%c0_13, %c0_14], %31 {strides = array<i32>} : memref<16x32xf32, #tpu.memory_space<vmem>>, vector<16x32xf32>,
    return
  }
  func.func @transform_0(%arg0: i32) -> (i32, i32) {
    %c0_i32 = arith.constant 0 : i32
    %c0_i32_0 = arith.constant 0 : i32
    return %arg0, %c0_i32 : i32, i32
  }
  func.func @transform_1(%arg0: i32) -> (i32, i32) {
    %c0_i32 = arith.constant 0 : i32
    %c0_i32_0 = arith.constant 0 : i32
    %c0_i32_1 = arith.constant 0 : i32
    return %c0_i32, %c0_i32_0 : i32, i32
  }
  func.func @transform_2(%arg0: i32) -> (i32, i32) {
    %c0_i32 = arith.constant 0 : i32
    %c0_i32_0 = arith.constant 0 : i32
    %c0_i32_1 = arith.constant 0 : i32
    return %c0_i32, %c0_i32_0 : i32, i32
  }
  func.func @transform_3(%arg0: i32) -> (i32, i32) {
    %c0_i32 = arith.constant 0 : i32
    %c0_i32_0 = arith.constant 0 : i32
    return %arg0, %c0_i32 : i32, i32
  }
}

</mosaic_0001>

<llo_original>
// kernel: tpu_custom_call.1
$region0: #{tpu_custom_call.1}
  #allocation0 [shape = 'u32[]', space=smem, size = 0x4, offset = 0x4, fixed_abs, tag = 'smem constant byte address 0x4 - core index']
  #allocation1 [shape = 'u32[144,128]{1,0:T(1,128)}', space=vmem, size = 0x12000, scoped, tag = 'internal scratch']
  %s0 = inlined_call_operand.hbm [shape: f32[16,32], index: 0, kind: input, shape index: {}]
  %s1 = inlined_call_operand.hbm [shape: f32[32,32], index: 1, kind: input, shape index: {}]
  %s2 = inlined_call_operand.vmem [shape: f32[3,32], index: 2, kind: input, shape index: {}]
  %s3 = inlined_call_operand.hbm [shape: f32[16,32], index: 3, kind: output, shape index: {}]
  %s4 = sld [smem:[#allocation0]]
  $region30: #{tpu_custom_call.1} parent=0
    _
  %s6 = ssub.s32 1, %s4
  %s7 = scalar_select 0, %s6, %s4
  $region1: #{tpu_custom_call.1} parent=0
    #allocation2 [shape = 'u8[8192]{0}', space=vmem, size = 0x2000, scoped, tag = 'input window, operand 0, single buffered']
    #allocation3 [shape = 's32[1]{0}', space=sflag, size = 0x4, scoped, tag = 'scoped memory for tpu_custom_call.1']
    #allocation4 [shape = 's32[1]{0}', space=sflag, size = 0x4, scoped, tag = 'scoped memory for tpu_custom_call.1']
    #allocation5 [shape = 'u8[16384]{0}', space=vmem, size = 0x4000, scoped, tag = 'input window, operand 1, single buffered']
    #allocation6 [shape = 's32[1]{0}', space=sflag, size = 0x4, scoped, tag = 'scoped memory for tpu_custom_call.1']
    #allocation7 [shape = 'u8[8192]{0}', space=vmem, size = 0x2000, scoped, tag = 'output window, operand 0, single buffered']
    %8 = vsyncpa [#allocation3], 0
    %9 = vsyncpa [#allocation6], 0
    %10 = vsyncpa [#allocation4], 0
    // Predicated region
    $region2: #{tpu_custom_call.1} parent=1 // pred_check
      _
    $region3: #{tpu_custom_call.1} parent=1 // pred_check_branch
      %12 = sbr.rel (0) target = $region5
    $region4: #{tpu_custom_call.1} parent=1 // pred_region
      %s14 = ssub.s32 256, 256
      %15 = vsyncadd [#allocation3], %s14
      %s16 = sshll.u32 [#allocation2], 4
      %s17 = int_to_ptr.vmem [resolvable:$true] %s16
      %22 = dma.hbm_to_vmem [thread:$0]  %s0, 256, %s17, [#allocation3], 128, 128, 8
    $region5: #{tpu_custom_call.1} parent=1 // pred_fallthru
      _
    // Predicated region
    $region6: #{tpu_custom_call.1} parent=1 // pred_check
      _
    $region7: #{tpu_custom_call.1} parent=1 // pred_check_branch
      %24 = sbr.rel (0) target = $region9
    $region8: #{tpu_custom_call.1} parent=1 // pred_region
      %s26 = ssub.s32 512, 512
      %27 = vsyncadd [#allocation6], %s26
      %s28 = sshll.u32 [#allocation5], 4
      %s29 = int_to_ptr.vmem [resolvable:$true] %s28
      %34 = dma.hbm_to_vmem [thread:$0]  %s1, 512, %s29, [#allocation6], 128, 128, 8
    $region9: #{tpu_custom_call.1} parent=1 // pred_fallthru
      _
    // Predicated region
    $region10: #{tpu_custom_call.1} parent=1 // pred_check
      _
    $region11: #{tpu_custom_call.1} parent=1 // pred_check_branch
      %36 = sbr.rel (0) target = $region13
    $region12: #{tpu_custom_call.1} parent=1 // pred_region
      _
    $region13: #{tpu_custom_call.1} parent=1 // pred_fallthru
      _
    // Predicated region
    $region14: #{tpu_custom_call.1} parent=1 // pred_check
      _
    $region15: #{tpu_custom_call.1} parent=1 // pred_check_branch
      %38 = sbr.rel (0) target = $region17
    $region16: #{tpu_custom_call.1} parent=1 // pred_region
      %39 = dma.done [#allocation3], 256
    $region17: #{tpu_custom_call.1} parent=1 // pred_fallthru
      _
    // Predicated region
    $region18: #{tpu_custom_call.1} parent=1 // pred_check
      _
    $region19: #{tpu_custom_call.1} parent=1 // pred_check_branch
      %41 = sbr.rel (0) target = $region21
    $region20: #{tpu_custom_call.1} parent=1 // pred_region
      %42 = dma.done [#allocation6], 512
    $region21: #{tpu_custom_call.1} parent=1 // pred_fallthru
      _
    %v43 = vld [vmem:[#allocation2] sm:$0xff]
    %v44 = vld [vmem:[#allocation2 + $0x8] sm:$0xff]
    %v45 = vld [vmem:[#allocation5] sm:$0xff]
    %v46 = vld [vmem:[#allocation5 + $0x8] sm:$0xff]
    %v47 = vld [vmem:[#allocation5 + $0x10] sm:$0xff]
    %v48 = vld [vmem:[#allocation5 + $0x18] sm:$0xff]
    %v49 = vld [vmem:[%s2] sm:$0x1]
    %v50 = vlaneseq
    %v51 = vshrl.u32 %v50, 7
    %v52 = vsub.s32 0, %v51
    %v53 = vrot.slane %v49, %v52
    %vm54 = vcmask 261120
    %v56 = vsel %vm54, %v43, 0
    %v59 = vsel %vm54, %v44, 0
    %61 = vmatprep.subr.mxu0 0.0
    %62 = vmatpush1.msra.mxu0 %v45
    %63 = vmatprep.subr.mxu0 0.0
    %64 = vmatpush1.msra.mxu0 %v46
    %65 = vmatprep.subr.mxu0 0.0
    %66 = vmatpush1.msra.mxu0 %v47
    %67 = vmatprep.subr.mxu0 0.0
    %68 = vmatpush1.msra.mxu0 %v48
    %69 = vmatprep.subr.mxu0 0.0
    %70 = vmatpush1.msra.mxu0 0.0
    %71 = vmatprep.subr.mxu0 0.0
    %72 = vmatpush1.msra.mxu0 0.0
    %73 = vmatprep.subr.mxu0 0.0
    %74 = vmatpush1.msra.mxu0 0.0
    %75 = vmatprep.subr.mxu0 0.0
    %76 = vmatpush1.msra.mxu0 0.0
    %77 = vmatprep.subr.mxu0 0.0
    %78 = vmatpush1.msra.mxu0 0.0
    %79 = vmatprep.subr.mxu0 0.0
    %80 = vmatpush1.msra.mxu0 0.0
    %81 = vmatprep.subr.mxu0 0.0
    %82 = vmatpush1.msra.mxu0 0.0
    %83 = vmatprep.subr.mxu0 0.0
    %84 = vmatpush1.msra.mxu0 0.0
    %85 = vmatprep.subr.mxu0 0.0
    %86 = vmatpush1.msra.mxu0 0.0
    %87 = vmatprep.subr.mxu0 0.0
    %88 = vmatpush1.msra.mxu0 0.0
    %89 = vmatprep.subr.mxu0 0.0
    %90 = vmatpush1.msra.mxu0 0.0
    %91 = vmatprep.subr.mxu0 0.0
    %92 = vmatpush1.msra.mxu0 0.0
    %93 = vmatprep.subr.mxu0 0.0
    %94 = vmatpush1.msra.mxu0 0.0
    %95 = vmatprep.subr.mxu0 0.0
    %96 = vmatpush1.msra.mxu0 0.0
    %97 = vmatprep.subr.mxu0 0.0
    %98 = vmatpush1.msra.mxu0 0.0
    %99 = vmatprep.subr.mxu0 0.0
    %100 = vmatpush1.msra.mxu0 0.0
    %101 = vmatprep.subr.mxu0 0.0
    %102 = vmatpush1.msra.mxu0 0.0
    %103 = vmatprep.subr.mxu0 0.0
    %104 = vmatpush1.msra.mxu0 0.0
    %105 = vmatprep.subr.mxu0 0.0
    %106 = vmatpush1.msra.mxu0 0.0
    %107 = vmatprep.subr.mxu0 0.0
    %108 = vmatpush1.msra.mxu0 0.0
    %109 = vmatprep.subr.mxu0 0.0
    %110 = vmatpush1.msra.mxu0 0.0
    %111 = vmatprep.subr.mxu0 0.0
    %112 = vmatpush1.msra.mxu0 0.0
    %113 = vmatprep.subr.mxu0 0.0
    %114 = vmatpush1.msra.mxu0 0.0
    %115 = vmatprep.subr.mxu0 0.0
    %116 = vmatpush1.msra.mxu0 0.0
    %117 = vmatprep.subr.mxu0 0.0
    %118 = vmatpush1.msra.mxu0 0.0
    %119 = vmatprep.subr.mxu0 0.0
    %120 = vmatpush1.msra.mxu0 0.0
    %121 = vmatprep.subr.mxu0 0.0
    %122 = vmatpush1.msra.mxu0 0.0
    %123 = vmatprep.subr.mxu0 0.0
    %124 = vmatpush1.msra.mxu0 0.0
    %125 = vmatprep.mubr.f32.mxu0 0.0
    %126 = vmatmul.mubr.f32.gmra.mrb[0].mxu0 %v56
    %v127 = vpop.f32.mrb[0].mxu0
    %v128 = vadd.f32 %v53, %v127
    %v129 = vpop.f32.mrb[0].mxu0
    %130 = vmatprep.mubr.f32.mxu0 0.0
    %131 = vmatmul.mubr.f32.gmra.mrb[0].mxu0 %v59
    %v132 = vpop.f32.mrb[0].mxu0
    %v133 = vadd.f32 %v53, %v132
    %v134 = vpop.f32.mrb[0].mxu0
    %135 = vdwg.mxu0
    %v136 = vsel %vm54, %v128, 0.0
    %137 = vadd.xlane.f32.xlu0 %v136
    %v138 = vpop.xlane.xlu0 %137
    %v139 = vsel %vm54, %v133, 0.0
    %140 = vadd.xlane.f32.xlu0 %v139
    %v141 = vpop.xlane.xlu0 %140
    %v142 = vmul.f32 %v128, %v128
    %v143 = vmul.f32 %v133, %v133
    %v144 = vsel %vm54, %v142, 0.0
    %145 = vadd.xlane.f32.xlu0 %v144
    %v146 = vpop.xlane.xlu0 %145
    %v147 = vsel %vm54, %v143, 0.0
    %148 = vadd.xlane.f32.xlu0 %v147
    %v149 = vpop.xlane.xlu0 %148
    %v150 = vmul.f32 %v138, 0.03125
    %v151 = vmul.f32 %v141, 0.03125
    %v152 = vmul.f32 %v146, 0.03125
    %v153 = vmul.f32 %v149, 0.03125
    %v154 = vmul.f32 %v150, %v150
    %v155 = vmul.f32 %v151, %v151
    %v156 = vsub.f32 %v152, %v154
    %v157 = vsub.f32 %v153, %v155
    %v158 = vmax.f32 %v156, 0.0
    %v159 = vmax.f32 %v157, 0.0
    %v160 = vadd.f32 %v158, 1e-12
    %v161 = vadd.f32 %v159, 1e-12
    %v162 = vrsqrt.pop %v160
    %v163 = vrsqrt.pop %v161
    %v164 = vsub.f32 %v128, %v150
    %v165 = vsub.f32 %v133, %v151
    %v166 = vmul.f32 %v164, %v162
    %v167 = vmul.f32 %v165, %v163
    %v168 = vld [vmem:[%s2 + $0x1] sm:$0x1]
    %v169 = vld [vmem:[%s2 + $0x2] sm:$0x1]
    %v170 = vlaneseq
    %v171 = vshrl.u32 %v170, 7
    %v172 = vsub.s32 0, %v171
    %v173 = vrot.slane %v168, %v172
    %v174 = vmul.f32 %v173, %v166
    %v175 = vmul.f32 %v173, %v167
    %v176 = vlaneseq
    %v177 = vshrl.u32 %v176, 7
    %v178 = vsub.s32 0, %v177
    %v179 = vrot.slane %v169, %v178
    %v180 = vadd.f32 %v174, %v179
    %v181 = vadd.f32 %v175, %v179
    %182 = vst.msk [vmem:[#allocation7] sm:$0xff] %vm54, %v180
    %183 = vst.msk [vmem:[#allocation7 + $0x8] sm:$0xff] %vm54, %v181
    // Predicated region
    $region22: #{tpu_custom_call.1} parent=1 // pred_check
      _
    $region23: #{tpu_custom_call.1} parent=1 // pred_check_branch
      %185 = sbr.rel (0) target = $region25
    $region24: #{tpu_custom_call.1} parent=1 // pred_region
      %s187 = ssub.s32 256, 256
      %188 = vsyncadd [#allocation4], %s187
      %s189 = sshll.u32 [#allocation7], 4
      %s190 = int_to_ptr.vmem [resolvable:$true] %s189
      %195 = dma.vmem_to_hbm [thread:$0]  %s190, 256, %s3, [#allocation4], 128, 128, 8
    $region25: #{tpu_custom_call.1} parent=1 // pred_fallthru
      _
    // Predicated region
    $region26: #{tpu_custom_call.1} parent=1 // pred_check
      _
    $region27: #{tpu_custom_call.1} parent=1 // pred_check_branch
      %197 = sbr.rel (0) target = $region29
    $region28: #{tpu_custom_call.1} parent=1 // pred_region
      %198 = dma.done [#allocation4], 256
    $region29: #{tpu_custom_call.1} parent=1 // pred_fallthru
      _
    %199 = vsyncpa [#allocation3], 1
    %200 = vsyncpa [#allocation6], 1
    %201 = vsyncpa [#allocation4], 1

</llo_original>
